<compile_context>
chip_gen: v7x
topology: tpu7x:2x2x1
jax: 0.10.0
libtpu: 0.0.40
codegen_flags: <defaults>
</compile_context>

<pallas_src>
import jax
import jax.numpy as jnp
from jax.experimental import pallas as pl
from jax.experimental.pallas import tpu as pltpu

_LANE = 128   # lane width: output/hidden feature dims padded to this
_SUB = 8      # sublane granularity: batch tiles padded to this


def _round_up(x, m):
    return ((x + m - 1) // m) * m


# --------------------------------------------------------------------------
# Kernel body: whole 4-layer MLP (4 matmuls + bias adds + 3 ReLUs).
# --------------------------------------------------------------------------
def _mlp_kernel(x_ref, w1_ref, w234_ref, b_ref, o_ref):
    def lin(h, w, layer_idx):
        # Cast activations to the weight dtype (fp32 or bf16) for the MXU;
        # accumulate in fp32.  Bias is a (1, ch_pad) static row slice of the
        # stacked bias slab, broadcast over the batch tile.
        acc = jnp.dot(h.astype(w.dtype), w, preferred_element_type=jnp.float32)
        return acc + b_ref[layer_idx:layer_idx + 1, :]

    h = x_ref[...]
    h = jnp.maximum(lin(h, w1_ref[...], 0), 0.0)      # Linear + ReLU
    h = jnp.maximum(lin(h, w234_ref[0], 1), 0.0)      # Linear + ReLU
    h = jnp.maximum(lin(h, w234_ref[1], 2), 0.0)      # Linear + ReLU
    h = lin(h, w234_ref[2], 3)                        # final Linear (no act)
    o_ref[...] = h.astype(o_ref.dtype)


# --------------------------------------------------------------------------
# One-time parameter preparation (hoisted out of the per-call hot path).
# --------------------------------------------------------------------------
def prepare_params(params, *, weights_dtype=None, lane_multiple=_LANE):
    """Pad / cast / stack Linear params ONCE.

    params: dict with w1..w4 as (in_features, out_features), b1..b4 as
            (1, out_features).
    weights_dtype: optional cast for the weight matrices (e.g. jnp.bfloat16
            on v7x to halve weight DMA / VMEM; accumulation stays fp32).
    lane_multiple: 128 by default; use 256 on v6e/v7x when chans is large
            and the kernel is MXU-bound (2x256^2 MXU tiles).
    """
    in_chans = params["w1"].shape[0]
    chans = params["w4"].shape[1]
    ch_pad = _round_up(chans, lane_multiple)
    wdt = weights_dtype if weights_dtype is not None else params["w1"].dtype

    def pad_cols(a, cols):
        return jnp.pad(a, ((0, 0), (0, cols - a.shape[1])))

    def pad2(a, rows, cols):
        return jnp.pad(a, ((0, rows - a.shape[0]), (0, cols - a.shape[1])))

    # Zero padding keeps the math exact: padded weight columns + padded bias
    # columns are 0, so padded hidden columns stay 0 through ReLU and
    # contribute nothing to later layers.
    w1 = pad_cols(params["w1"], ch_pad).astype(wdt)                 # (in, ch_pad)
    w234 = jnp.stack(
        [pad2(params[f"w{i}"], ch_pad, ch_pad) for i in (2, 3, 4)]
    ).astype(wdt)                                                   # (3, ch_pad, ch_pad)
    bias_rows = [
        pad_cols(params[f"b{i}"].reshape(1, -1).astype(jnp.float32), ch_pad)
        for i in (1, 2, 3, 4)
    ]
    b = jnp.concatenate(
        bias_rows + [jnp.zeros((_SUB - 4, ch_pad), jnp.float32)], axis=0
    )                                                               # (8, ch_pad)

    return {"w1": w1, "w234": w234, "b": b,
            "in_chans": in_chans, "chans": chans, "ch_pad": ch_pad}


# --------------------------------------------------------------------------
# pallas_call builder.
# --------------------------------------------------------------------------
def _build_call(b_pad, in_chans, chans, ch_pad, batch_tile, out_dtype,
                wdt_itemsize, single_buffer_weights):
    n_steps = b_pad // batch_tile

    def const_spec(shape):
        idx = lambda i: (0,) * len(shape)        # same block every grid step
        if single_buffer_weights:
            # Constant index_map => fetched once; single buffer halves the
            # resident weight VMEM with zero pipelining loss.
            return pl.BlockSpec(shape, idx, pipeline_mode=pl.Buffered(1))
        return pl.BlockSpec(shape, idx)

    in_specs = [
        pl.BlockSpec((batch_tile, in_chans), lambda i: (i, 0)),     # x
        const_spec((in_chans, ch_pad)),                             # w1
        const_spec((3, ch_pad, ch_pad)),                            # w2..w4
        const_spec((_SUB, ch_pad)),                                 # b1..b4 slab
    ]
    out_spec = pl.BlockSpec((batch_tile, ch_pad), lambda i: (i, 0))

    # --- VMEM budget derived from the real footprint (v7x: 64 MiB total,
    #     v5e/v6e scoped defaults 16 / 32 MiB). --------------------------------
    wbytes = (in_chans * ch_pad + 3 * ch_pad * ch_pad) * wdt_itemsize
    bbytes = _SUB * ch_pad * 4
    act_bytes = 2 * batch_tile * (in_chans + ch_pad) * 4            # x + out, dbl-buf
    wbuf = 1 if single_buffer_weights else 2
    vmem_limit = int(min(max(wbuf * (wbytes + bbytes) + act_bytes + (4 << 20),
                             16 << 20),
                         60 << 20))
    # TODO(synk): for chans >~ 2048 (fp32) add an N/K grid axis over ch_pad
    # instead of keeping all weights resident (v7x 64 MiB VMEM).

    flops = 2 * b_pad * (in_chans * ch_pad + 3 * ch_pad * ch_pad)
    bytes_accessed = (b_pad * in_chans * 4 + wbytes + bbytes
                      + b_pad * ch_pad * jnp.dtype(out_dtype).itemsize)

    return pl.pallas_call(
        _mlp_kernel,
        out_shape=jax.ShapeDtypeStruct((b_pad, ch_pad), out_dtype),
        grid_spec=pl.GridSpec(
            grid=(n_steps,),
            in_specs=in_specs,
            out_specs=out_spec,
        ),
        compiler_params=pltpu.CompilerParams(
            dimension_semantics=("parallel",),
            vmem_limit_bytes=vmem_limit),
        cost_estimate=pl.CostEstimate(
            flops=flops, transcendentals=0, bytes_accessed=bytes_accessed),
    )


# --------------------------------------------------------------------------
# Forward pass (hot path): no parameter padding/casting here.
# --------------------------------------------------------------------------
def adain_code_generator(c, prep, *, batch_tile=None, out_dtype=None,
                         slice_output=True):
    """Forward pass of AdaIN_code_generator.

    c:    (B, in_chans) activations.
    prep: output of prepare_params (call once, reuse across steps).
    slice_output: if False, return the lane-padded (b_pad, ch_pad) slab and
                  let the consumer slice lazily (saves an XLA copy).
    """
    B = c.shape[0]
    in_chans, chans, ch_pad = prep["in_chans"], prep["chans"], prep["ch_pad"]
    assert c.shape[1] == in_chans
    out_dtype = out_dtype if out_dtype is not None else c.dtype

    # Batch tiling: one step for small B; 512-row tiles for large B
    # (>= 2 parallel steps -> both v7x TensorCores, few grid steps).
    if batch_tile is None:
        batch_tile = _round_up(B, _SUB) if B <= 512 else 512
    batch_tile = _round_up(batch_tile, _SUB)
    b_pad = _round_up(B, batch_tile)

    # Only pad x rows when actually needed (skipped for aligned B).
    x = c if b_pad == B else jnp.pad(c, ((0, b_pad - B), (0, 0)))

    wdt_itemsize = jnp.dtype(prep["w1"].dtype).itemsize
    args = (x, prep["w1"], prep["w234"], prep["b"])
    try:
        out = _build_call(b_pad, in_chans, chans, ch_pad, batch_tile,
                          out_dtype, wdt_itemsize,
                          single_buffer_weights=True)(*args)
    except Exception:
        # Fallback if this Pallas build rejects pipeline_mode=Buffered(1).
        out = _build_call(b_pad, in_chans, chans, ch_pad, batch_tile,
                          out_dtype, wdt_itemsize,
                          single_buffer_weights=False)(*args)

    if slice_output and (b_pad != B or ch_pad != chans):
        out = out[:B, :chans]
    return out


# --------------------------------------------------------------------------
# Synthetic init + pure-JAX reference.
# --------------------------------------------------------------------------
def init_params(key, in_chans, chans):
    """Deterministic synthetic init (nn.Linear-style uniform bounds)."""
    ks = jax.random.split(key, 8)
    dims = [(in_chans, chans), (chans, chans), (chans, chans), (chans, chans)]
    params = {}
    for li, (fan_in, fan_out) in enumerate(dims, start=1):
        bound = 1.0 / jnp.sqrt(fan_in)
        # Stored as (in_features, out_features): equivalent to PyTorch W.T
        params[f"w{li}"] = jax.random.uniform(
            ks[2 * (li - 1)], (fan_in, fan_out), jnp.float32, -bound, bound)
        params[f"b{li}"] = jax.random.uniform(
            ks[2 * (li - 1) + 1], (1, fan_out), jnp.float32, -bound, bound)
    return params


def reference_forward(c, params):
    """Pure-JAX reference (mirrors the PyTorch forward)."""
    h = jnp.maximum(c @ params["w1"] + params["b1"], 0.0)
    h = jnp.maximum(h @ params["w2"] + params["b2"], 0.0)
    h = jnp.maximum(h @ params["w3"] + params["b3"], 0.0)
    return h @ params["w4"] + params["b4"]


if __name__ == "__main__":
    key = jax.random.PRNGKey(0)
    k_param, k_input = jax.random.split(key)

    batch, in_chans, chans = 16, 32, 64   # small, module-consistent sizes
    params = init_params(k_param, in_chans, chans)
    c = jax.random.normal(k_input, (batch, in_chans), dtype=jnp.float32)

    # Parameter prep is hoisted: done ONCE, outside the per-call hot path.
    prep = prepare_params(params)

    # fp32 path: strict correctness vs. the pure-JAX reference.
    out = adain_code_generator(c, prep)
    out = jax.block_until_ready(out)
    ref = reference_forward(c, params)
    assert out.shape == (batch, chans)
    assert jnp.allclose(out, ref, atol=1e-5, rtol=1e-5), "fp32 mismatch vs reference"

    # bf16-weight path (fp32 accumulation); activations are also cast to
    # bf16 per layer, so only shape/finiteness are asserted here.
    prep_bf16 = prepare_params(params, weights_dtype=jnp.bfloat16)
    out_bf16 = jax.block_until_ready(adain_code_generator(c, prep_bf16))
    assert out_bf16.shape == (batch, chans)
    assert bool(jnp.all(jnp.isfinite(out_bf16))), "bf16 path produced non-finite values"

    print("KERNEL_OK")
</pallas_src>

<mosaic_0001>
module attributes {stable_mosaic.version = 11 : i64} {
  func.func @_mlp_kernel(%arg0: i32, %arg1: memref<16x32xf32, #tpu.memory_space<vmem>>, %arg2: memref<32x128xf32, #tpu.memory_space<vmem>>, %arg3: memref<3x128x128xf32, #tpu.memory_space<vmem>>, %arg4: memref<8x128xf32, #tpu.memory_space<vmem>>, %arg5: memref<16x128xf32, #tpu.memory_space<vmem>>) attributes {dimension_semantics = [#tpu.dimension_semantics<parallel>], iteration_bounds = array<i64: 1>, scalar_prefetch = 0 : i64, scratch_operands = 0 : i64, tpu.core_type = #tpu.core_type<tc>, window_params = [{transform_indices = @transform_0, window_bounds = array<i64: 16, 32>}, {pipeline_mode = #tpu.pipeline_mode<synchronous>, transform_indices = @transform_1, window_bounds = array<i64: 32, 128>}, {pipeline_mode = #tpu.pipeline_mode<synchronous>, transform_indices = @transform_2, window_bounds = array<i64: 3, 128, 128>}, {pipeline_mode = #tpu.pipeline_mode<synchronous>, transform_indices = @transform_3, window_bounds = array<i64: 8, 128>}, {transform_indices = @transform_4, window_bounds = array<i64: 16, 128>}]} {
    %c0 = arith.constant 0 : index
    %c0_0 = arith.constant 0 : index
    %0 = vector.load %arg1[%c0, %c0_0] : memref<16x32xf32, #tpu.memory_space<vmem>>, vector<16x32xf32>
    %c0_1 = arith.constant 0 : index
    %c0_2 = arith.constant 0 : index
    %1 = vector.load %arg2[%c0_1, %c0_2] : memref<32x128xf32, #tpu.memory_space<vmem>>, vector<32x128xf32>
    %cst = arith.constant dense<0.000000e+00> : vector<16x128xf32>
    %2 = tpu.matmul %0, %1, %cst {dimension_numbers = #tpu.dot_dimension_numbers<[1], [0], [0], [1], [0, 0, 1, 1], [], []>} : vector<16x32xf32>, vector<32x128xf32>, vector<16x128xf32> -> vector<16x128xf32>
    %c0_3 = arith.constant 0 : index
    %c0_4 = arith.constant 0 : index
    %3 = vector.load %arg4[%c0_3, %c0_4] : memref<8x128xf32, #tpu.memory_space<vmem>>, vector<1x128xf32>
    %4 = vector.broadcast %3 : vector<1x128xf32> to vector<16x128xf32>
    %5 = arith.addf %2, %4 : vector<16x128xf32>
    %cst_5 = arith.constant 0.000000e+00 : f32
    %6 = vector.broadcast %cst_5 : f32 to vector<16x128xf32>
    %7 = arith.maximumf %5, %6 : vector<16x128xf32>
    %c0_6 = arith.constant 0 : index
    %c0_7 = arith.constant 0 : index
    %c0_8 = arith.constant 0 : index
    %8 = vector.load %arg3[%c0_6, %c0_7, %c0_8] : memref<3x128x128xf32, #tpu.memory_space<vmem>>, vector<1x128x128xf32>
    %9 = vector.shape_cast %8 : vector<1x128x128xf32> to vector<128x128xf32>
    %cst_9 = arith.constant dense<0.000000e+00> : vector<16x128xf32>
    %10 = tpu.matmul %7, %9, %cst_9 {dimension_numbers = #tpu.dot_dimension_numbers<[1], [0], [0], [1], [0, 0, 1, 1], [], []>} : vector<16x128xf32>, vector<128x128xf32>, vector<16x128xf32> -> vector<16x128xf32>
    %c1 = arith.constant 1 : index
    %c0_10 = arith.constant 0 : index
    %11 = vector.load %arg4[%c1, %c0_10] : memref<8x128xf32, #tpu.memory_space<vmem>>, vector<1x128xf32>
    %12 = vector.broadcast %11 : vector<1x128xf32> to vector<16x128xf32>
    %13 = arith.addf %10, %12 : vector<16x128xf32>
    %cst_11 = arith.constant 0.000000e+00 : f32
    %14 = vector.broadcast %cst_11 : f32 to vector<16x128xf32>
    %15 = arith.maximumf %13, %14 : vector<16x128xf32>
    %c1_12 = arith.constant 1 : index
    %c0_13 = arith.constant 0 : index
    %c0_14 = arith.constant 0 : index
    %16 = vector.load %arg3[%c1_12, %c0_13, %c0_14] : memref<3x128x128xf32, #tpu.memory_space<vmem>>, vector<1x128x128xf32>
    %17 = vector.shape_cast %16 : vector<1x128x128xf32> to vector<128x128xf32>
    %cst_15 = arith.constant dense<0.000000e+00> : vector<16x128xf32>
    %18 = tpu.matmul %15, %17, %cst_15 {dimension_numbers = #tpu.dot_dimension_numbers<[1], [0], [0], [1], [0, 0, 1, 1], [], []>} : vector<16x128xf32>, vector<128x128xf32>, vector<16x128xf32> -> vector<16x128xf32>
    %c2 = arith.constant 2 : index
    %c0_16 = arith.constant 0 : index
    %19 = vector.load %arg4[%c2, %c0_16] : memref<8x128xf32, #tpu.memory_space<vmem>>, vector<1x128xf32>
    %20 = vector.broadcast %19 : vector<1x128xf32> to vector<16x128xf32>
    %21 = arith.addf %18, %20 : vector<16x128xf32>
    %cst_17 = arith.constant 0.000000e+00 : f32
    %22 = vector.broadcast %cst_17 : f32 to vector<16x128xf32>
    %23 = arith.maximumf %21, %22 : vector<16x128xf32>
    %c2_18 = arith.constant 2 : index
    %c0_19 = arith.constant 0 : index
    %c0_20 = arith.constant 0 : index
    %24 = vector.load %arg3[%c2_18, %c0_19, %c0_20] : memref<3x128x128xf32, #tpu.memory_space<vmem>>, vector<1x128x128xf32>
    %25 = vector.shape_cast %24 : vector<1x128x128xf32> to vector<128x128xf32>
    %cst_21 = arith.constant dense<0.000000e+00> : vector<16x128xf32>
    %26 = tpu.matmul %23, %25, %cst_21 {dimension_numbers = #tpu.dot_dimension_numbers<[1], [0], [0], [1], [0, 0, 1, 1], [], []>} : vector<16x128xf32>, vector<128x128xf32>, vector<16x128xf32> -> vector<16x128xf32>
    %c3 = arith.constant 3 : index
    %c0_22 = arith.constant 0 : index
    %27 = vector.load %arg4[%c3, %c0_22] : memref<8x128xf32, #tpu.memory_space<vmem>>, vector<1x128xf32>
    %28 = vector.broadcast %27 : vector<1x128xf32> to vector<16x128xf32>
    %29 = arith.addf %26, %28 : vector<16x128xf32>
    %c0_23 = arith.constant 0 : index
    %c0_24 = arith.constant 0 : index
    %30 = vector.load %arg5[%c0_23, %c0_24] : memref<16x128xf32, #tpu.memory_space<vmem>>, vector<16x128xf32>
    tpu.vector_store %arg5[%c0_23, %c0_24], %29 {strides = array<i32>} : memref<16x128xf32, #tpu.memory_space<vmem>>, vector<16x128xf32>,
    return
  }
  func.func @transform_0(%arg0: i32) -> (i32, i32) {
    %c0_i32 = arith.constant 0 : i32
    %c0_i32_0 = arith.constant 0 : i32
    return %arg0, %c0_i32 : i32, i32
  }
  func.func @transform_1(%arg0: i32) -> (i32, i32) {
    %c0_i32 = arith.constant 0 : i32
    %c0_i32_0 = arith.constant 0 : i32
    %c0_i32_1 = arith.constant 0 : i32
    return %c0_i32, %c0_i32_0 : i32, i32
  }
  func.func @transform_2(%arg0: i32) -> (i32, i32, i32) {
    %c0_i32 = arith.constant 0 : i32
    %c0_i32_0 = arith.constant 0 : i32
    %c0_i32_1 = arith.constant 0 : i32
    %c0_i32_2 = arith.constant 0 : i32
    return %c0_i32, %c0_i32_0, %c0_i32_1 : i32, i32, i32
  }
  func.func @transform_3(%arg0: i32) -> (i32, i32) {
    %c0_i32 = arith.constant 0 : i32
    %c0_i32_0 = arith.constant 0 : i32
    %c0_i32_1 = arith.constant 0 : i32
    return %c0_i32, %c0_i32_0 : i32, i32
  }
  func.func @transform_4(%arg0: i32) -> (i32, i32) {
    %c0_i32 = arith.constant 0 : i32
    %c0_i32_0 = arith.constant 0 : i32
    return %arg0, %c0_i32 : i32, i32
  }
}

module attributes {stable_mosaic.version = 11 : i64} {
  func.func @_mlp_kernel(%arg0: i32, %arg1: memref<16x32xf32, #tpu.memory_space<vmem>>, %arg2: memref<32x128xf32, #tpu.memory_space<vmem>>, %arg3: memref<3x128x128xf32, #tpu.memory_space<vmem>>, %arg4: memref<8x128xf32, #tpu.memory_space<vmem>>, %arg5: memref<16x128xf32, #tpu.memory_space<vmem>>) attributes {dimension_semantics = [#tpu.dimension_semantics<parallel>], iteration_bounds = array<i64: 1>, scalar_prefetch = 0 : i64, scratch_operands = 0 : i64, tpu.core_type = #tpu.core_type<tc>, window_params = [{transform_indices = @transform_0, window_bounds = array<i64: 16, 32>}, {pipeline_mode = #tpu.pipeline_mode<synchronous>, transform_indices = @transform_1, window_bounds = array<i64: 32, 128>}, {pipeline_mode = #tpu.pipeline_mode<synchronous>, transform_indices = @transform_2, window_bounds = array<i64: 3, 128, 128>}, {pipeline_mode = #tpu.pipeline_mode<synchronous>, transform_indices = @transform_3, window_bounds = array<i64: 8, 128>}, {transform_indices = @transform_4, window_bounds = array<i64: 16, 128>}]} {
    %c0 = arith.constant 0 : index
    %c0_0 = arith.constant 0 : index
    %0 = vector.load %arg1[%c0, %c0_0] : memref<16x32xf32, #tpu.memory_space<vmem>>, vector<16x32xf32>
    %c0_1 = arith.constant 0 : index
    %c0_2 = arith.constant 0 : index
    %1 = vector.load %arg2[%c0_1, %c0_2] : memref<32x128xf32, #tpu.memory_space<vmem>>, vector<32x128xf32>
    %cst = arith.constant dense<0.000000e+00> : vector<16x128xf32>
    %2 = tpu.matmul %0, %1, %cst {dimension_numbers = #tpu.dot_dimension_numbers<[1], [0], [0], [1], [0, 0, 1, 1], [], []>} : vector<16x32xf32>, vector<32x128xf32>, vector<16x128xf32> -> vector<16x128xf32>
    %c0_3 = arith.constant 0 : index
    %c0_4 = arith.constant 0 : index
    %3 = vector.load %arg4[%c0_3, %c0_4] : memref<8x128xf32, #tpu.memory_space<vmem>>, vector<1x128xf32>
    %4 = vector.broadcast %3 : vector<1x128xf32> to vector<16x128xf32>
    %5 = arith.addf %2, %4 : vector<16x128xf32>
    %cst_5 = arith.constant 0.000000e+00 : f32
    %6 = vector.broadcast %cst_5 : f32 to vector<16x128xf32>
    %7 = arith.maximumf %5, %6 : vector<16x128xf32>
    %c0_6 = arith.constant 0 : index
    %c0_7 = arith.constant 0 : index
    %c0_8 = arith.constant 0 : index
    %8 = vector.load %arg3[%c0_6, %c0_7, %c0_8] : memref<3x128x128xf32, #tpu.memory_space<vmem>>, vector<1x128x128xf32>
    %9 = vector.shape_cast %8 : vector<1x128x128xf32> to vector<128x128xf32>
    %cst_9 = arith.constant dense<0.000000e+00> : vector<16x128xf32>
    %10 = tpu.matmul %7, %9, %cst_9 {dimension_numbers = #tpu.dot_dimension_numbers<[1], [0], [0], [1], [0, 0, 1, 1], [], []>} : vector<16x128xf32>, vector<128x128xf32>, vector<16x128xf32> -> vector<16x128xf32>
    %c1 = arith.constant 1 : index
    %c0_10 = arith.constant 0 : index
    %11 = vector.load %arg4[%c1, %c0_10] : memref<8x128xf32, #tpu.memory_space<vmem>>, vector<1x128xf32>
    %12 = vector.broadcast %11 : vector<1x128xf32> to vector<16x128xf32>
    %13 = arith.addf %10, %12 : vector<16x128xf32>
    %cst_11 = arith.constant 0.000000e+00 : f32
    %14 = vector.broadcast %cst_11 : f32 to vector<16x128xf32>
    %15 = arith.maximumf %13, %14 : vector<16x128xf32>
    %c1_12 = arith.constant 1 : index
    %c0_13 = arith.constant 0 : index
    %c0_14 = arith.constant 0 : index
    %16 = vector.load %arg3[%c1_12, %c0_13, %c0_14] : memref<3x128x128xf32, #tpu.memory_space<vmem>>, vector<1x128x128xf32>
    %17 = vector.shape_cast %16 : vector<1x128x128xf32> to vector<128x128xf32>
    %cst_15 = arith.constant dense<0.000000e+00> : vector<16x128xf32>
    %18 = tpu.matmul %15, %17, %cst_15 {dimension_numbers = #tpu.dot_dimension_numbers<[1], [0], [0], [1], [0, 0, 1, 1], [], []>} : vector<16x128xf32>, vector<128x128xf32>, vector<16x128xf32> -> vector<16x128xf32>
    %c2 = arith.constant 2 : index
    %c0_16 = arith.constant 0 : index
    %19 = vector.load %arg4[%c2, %c0_16] : memref<8x128xf32, #tpu.memory_space<vmem>>, vector<1x128xf32>
    %20 = vector.broadcast %19 : vector<1x128xf32> to vector<16x128xf32>
    %21 = arith.addf %18, %20 : vector<16x128xf32>
    %cst_17 = arith.constant 0.000000e+00 : f32
    %22 = vector.broadcast %cst_17 : f32 to vector<16x128xf32>
    %23 = arith.maximumf %21, %22 : vector<16x128xf32>
    %c2_18 = arith.constant 2 : index
    %c0_19 = arith.constant 0 : index
    %c0_20 = arith.constant 0 : index
    %24 = vector.load %arg3[%c2_18, %c0_19, %c0_20] : memref<3x128x128xf32, #tpu.memory_space<vmem>>, vector<1x128x128xf32>
    %25 = vector.shape_cast %24 : vector<1x128x128xf32> to vector<128x128xf32>
    %cst_21 = arith.constant dense<0.000000e+00> : vector<16x128xf32>
    %26 = tpu.matmul %23, %25, %cst_21 {dimension_numbers = #tpu.dot_dimension_numbers<[1], [0], [0], [1], [0, 0, 1, 1], [], []>} : vector<16x128xf32>, vector<128x128xf32>, vector<16x128xf32> -> vector<16x128xf32>
    %c3 = arith.constant 3 : index
    %c0_22 = arith.constant 0 : index
    %27 = vector.load %arg4[%c3, %c0_22] : memref<8x128xf32, #tpu.memory_space<vmem>>, vector<1x128xf32>
    %28 = vector.broadcast %27 : vector<1x128xf32> to vector<16x128xf32>
    %29 = arith.addf %26, %28 : vector<16x128xf32>
    %c0_23 = arith.constant 0 : index
    %c0_24 = arith.constant 0 : index
    %30 = vector.load %arg5[%c0_23, %c0_24] : memref<16x128xf32, #tpu.memory_space<vmem>>, vector<16x128xf32>
    tpu.vector_store %arg5[%c0_23, %c0_24], %29 {strides = array<i32>} : memref<16x128xf32, #tpu.memory_space<vmem>>, vector<16x128xf32>,
    return
  }
  func.func @transform_0(%arg0: i32) -> (i32, i32) {
    %c0_i32 = arith.constant 0 : i32
    %c0_i32_0 = arith.constant 0 : i32
    return %arg0, %c0_i32 : i32, i32
  }
  func.func @transform_1(%arg0: i32) -> (i32, i32) {
    %c0_i32 = arith.constant 0 : i32
    %c0_i32_0 = arith.constant 0 : i32
    %c0_i32_1 = arith.constant 0 : i32
    return %c0_i32, %c0_i32_0 : i32, i32
  }
  func.func @transform_2(%arg0: i32) -> (i32, i32, i32) {
    %c0_i32 = arith.constant 0 : i32
    %c0_i32_0 = arith.constant 0 : i32
    %c0_i32_1 = arith.constant 0 : i32
    %c0_i32_2 = arith.constant 0 : i32
    return %c0_i32, %c0_i32_0, %c0_i32_1 : i32, i32, i32
  }
  func.func @transform_3(%arg0: i32) -> (i32, i32) {
    %c0_i32 = arith.constant 0 : i32
    %c0_i32_0 = arith.constant 0 : i32
    %c0_i32_1 = arith.constant 0 : i32
    return %c0_i32, %c0_i32_0 : i32, i32
  }
  func.func @transform_4(%arg0: i32) -> (i32, i32) {
    %c0_i32 = arith.constant 0 : i32
    %c0_i32_0 = arith.constant 0 : i32
    return %arg0, %c0_i32 : i32, i32
  }
}

</mosaic_0001>

<llo_original>
// kernel: tpu_custom_call.1
$region0: #{tpu_custom_call.1}
  #allocation0 [shape = 'u32[]', space=smem, size = 0x4, offset = 0x4, fixed_abs, tag = 'smem constant byte address 0x4 - core index']
  #allocation1 [shape = 'u32[144,128]{1,0:T(1,128)}', space=vmem, size = 0x12000, scoped, tag = 'internal scratch']
  %s0 = inlined_call_operand.hbm [shape: f32[16,32], index: 0, kind: input, shape index: {}]
  %s1 = inlined_call_operand.hbm [shape: f32[32,128], index: 1, kind: input, shape index: {}]
  %s2 = inlined_call_operand.hbm [shape: f32[3,128,128], index: 2, kind: input, shape index: {}]
  %s3 = inlined_call_operand.vmem [shape: f32[8,128], index: 3, kind: input, shape index: {}]
  %s4 = inlined_call_operand.hbm [shape: f32[16,128], index: 4, kind: output, shape index: {}]
  %s5 = sld [smem:[#allocation0]]
  $region38: #{tpu_custom_call.1} parent=0
    _
  %s7 = ssub.s32 1, %s5
  %s8 = scalar_select 0, %s7, %s5
  $region1: #{tpu_custom_call.1} parent=0
    #allocation2 [shape = 'u8[8192]{0}', space=vmem, size = 0x2000, scoped, tag = 'input window, operand 0, single buffered']
    #allocation3 [shape = 's32[1]{0}', space=sflag, size = 0x4, scoped, tag = 'scoped memory for tpu_custom_call.1']
    #allocation4 [shape = 's32[1]{0}', space=sflag, size = 0x4, scoped, tag = 'scoped memory for tpu_custom_call.1']
    #allocation5 [shape = 'u8[16384]{0}', space=vmem, size = 0x4000, scoped, tag = 'input window, operand 1, single buffered']
    #allocation6 [shape = 's32[1]{0}', space=sflag, size = 0x4, scoped, tag = 'scoped memory for tpu_custom_call.1']
    #allocation7 [shape = 'u8[196608]{0}', space=vmem, size = 0x30000, scoped, tag = 'input window, operand 2, single buffered']
    #allocation8 [shape = 'u8[8192]{0}', space=vmem, size = 0x2000, scoped, tag = 'output window, operand 0, single buffered']
    %9 = vsyncpa [#allocation3], 0
    %10 = vsyncpa [#allocation6], 0
    %11 = vsyncpa [#allocation4], 0
    // Predicated region
    $region2: #{tpu_custom_call.1} parent=1 // pred_check
      _
    $region3: #{tpu_custom_call.1} parent=1 // pred_check_branch
      %13 = sbr.rel (0) target = $region5
    $region4: #{tpu_custom_call.1} parent=1 // pred_region
      %s15 = ssub.s32 256, 256
      %16 = vsyncadd [#allocation3], %s15
      %s17 = sshll.u32 [#allocation2], 4
      %s18 = int_to_ptr.vmem [resolvable:$true] %s17
      %23 = dma.hbm_to_vmem [thread:$0]  %s0, 256, %s18, [#allocation3], 128, 128, 8
    $region5: #{tpu_custom_call.1} parent=1 // pred_fallthru
      _
    // Predicated region
    $region6: #{tpu_custom_call.1} parent=1 // pred_check
      _
    $region7: #{tpu_custom_call.1} parent=1 // pred_check_branch
      %25 = sbr.rel (0) target = $region9
    $region8: #{tpu_custom_call.1} parent=1 // pred_region
      %s27 = ssub.s32 512, 512
      %28 = vsyncadd [#allocation6], %s27
      %s29 = sshll.u32 [#allocation5], 4
      %s30 = int_to_ptr.vmem [resolvable:$true] %s29
      %35 = dma.hbm_to_vmem [thread:$0]  %s1, 512, %s30, [#allocation6], 128, 128, 8
    $region9: #{tpu_custom_call.1} parent=1 // pred_fallthru
      _
    // Predicated region
    $region10: #{tpu_custom_call.1} parent=1 // pred_check
      _
    $region11: #{tpu_custom_call.1} parent=1 // pred_check_branch
      %37 = sbr.rel (0) target = $region13
    $region12: #{tpu_custom_call.1} parent=1 // pred_region
      %s39 = ssub.s32 6144, 6144
      %40 = vsyncadd [#allocation6], %s39
      %s41 = sshll.u32 [#allocation7], 4
      %s42 = int_to_ptr.vmem [resolvable:$true] %s41
      %47 = dma.hbm_to_vmem [thread:$0]  %s2, 6144, %s42, [#allocation6], 128, 128, 8
    $region13: #{tpu_custom_call.1} parent=1 // pred_fallthru
      _
    // Predicated region
    $region14: #{tpu_custom_call.1} parent=1 // pred_check
      _
    $region15: #{tpu_custom_call.1} parent=1 // pred_check_branch
      %49 = sbr.rel (0) target = $region17
    $region16: #{tpu_custom_call.1} parent=1 // pred_region
      _
    $region17: #{tpu_custom_call.1} parent=1 // pred_fallthru
      _
    // Predicated region
    $region18: #{tpu_custom_call.1} parent=1 // pred_check
      _
    $region19: #{tpu_custom_call.1} parent=1 // pred_check_branch
      %51 = sbr.rel (0) target = $region21
    $region20: #{tpu_custom_call.1} parent=1 // pred_region
      %52 = dma.done [#allocation3], 256
    $region21: #{tpu_custom_call.1} parent=1 // pred_fallthru
      _
    // Predicated region
    $region22: #{tpu_custom_call.1} parent=1 // pred_check
      _
    $region23: #{tpu_custom_call.1} parent=1 // pred_check_branch
      %54 = sbr.rel (0) target = $region25
    $region24: #{tpu_custom_call.1} parent=1 // pred_region
      %55 = dma.done [#allocation6], 512
    $region25: #{tpu_custom_call.1} parent=1 // pred_fallthru
      _
    // Predicated region
    $region26: #{tpu_custom_call.1} parent=1 // pred_check
      _
    $region27: #{tpu_custom_call.1} parent=1 // pred_check_branch
      %57 = sbr.rel (0) target = $region29
    $region28: #{tpu_custom_call.1} parent=1 // pred_region
      %58 = dma.done [#allocation6], 6144
    $region29: #{tpu_custom_call.1} parent=1 // pred_fallthru
      _
    %v59 = vld [vmem:[#allocation2] sm:$0xff]
    %v60 = vld [vmem:[#allocation2 + $0x8] sm:$0xff]
    %v61 = vld [vmem:[#allocation5] sm:$0xff]
    %v62 = vld [vmem:[#allocation5 + $0x8] sm:$0xff]
    %v63 = vld [vmem:[#allocation5 + $0x10] sm:$0xff]
    %v64 = vld [vmem:[#allocation5 + $0x18] sm:$0xff]
    %v65 = vld [vmem:[%s3] sm:$0x1]
    %v66 = vlaneseq
    %v67 = vshrl.u32 %v66, 7
    %v68 = vsub.s32 0, %v67
    %v69 = vrot.slane %v65, %v68
    %vm70 = vcmask 261120
    %v72 = vsel %vm70, %v59, 0
    %v75 = vsel %vm70, %v60, 0
    %77 = vmatprep.subr.mxu0 0.0
    %78 = vmatpush1.msra.mxu0 %v61
    %79 = vmatprep.subr.mxu0 0.0
    %80 = vmatpush1.msra.mxu0 %v62
    %81 = vmatprep.subr.mxu0 0.0
    %82 = vmatpush1.msra.mxu0 %v63
    %83 = vmatprep.subr.mxu0 0.0
    %84 = vmatpush1.msra.mxu0 %v64
    %85 = vmatprep.subr.mxu0 0.0
    %86 = vmatpush1.msra.mxu0 0.0
    %87 = vmatprep.subr.mxu0 0.0
    %88 = vmatpush1.msra.mxu0 0.0
    %89 = vmatprep.subr.mxu0 0.0
    %90 = vmatpush1.msra.mxu0 0.0
    %91 = vmatprep.subr.mxu0 0.0
    %92 = vmatpush1.msra.mxu0 0.0
    %93 = vmatprep.subr.mxu0 0.0
    %94 = vmatpush1.msra.mxu0 0.0
    %95 = vmatprep.subr.mxu0 0.0
    %96 = vmatpush1.msra.mxu0 0.0
    %97 = vmatprep.subr.mxu0 0.0
    %98 = vmatpush1.msra.mxu0 0.0
    %99 = vmatprep.subr.mxu0 0.0
    %100 = vmatpush1.msra.mxu0 0.0
    %101 = vmatprep.subr.mxu0 0.0
    %102 = vmatpush1.msra.mxu0 0.0
    %103 = vmatprep.subr.mxu0 0.0
    %104 = vmatpush1.msra.mxu0 0.0
    %105 = vmatprep.subr.mxu0 0.0
    %106 = vmatpush1.msra.mxu0 0.0
    %107 = vmatprep.subr.mxu0 0.0
    %108 = vmatpush1.msra.mxu0 0.0
    %109 = vmatprep.subr.mxu0 0.0
    %110 = vmatpush1.msra.mxu0 0.0
    %111 = vmatprep.subr.mxu0 0.0
    %112 = vmatpush1.msra.mxu0 0.0
    %113 = vmatprep.subr.mxu0 0.0
    %114 = vmatpush1.msra.mxu0 0.0
    %115 = vmatprep.subr.mxu0 0.0
    %116 = vmatpush1.msra.mxu0 0.0
    %117 = vmatprep.subr.mxu0 0.0
    %118 = vmatpush1.msra.mxu0 0.0
    %119 = vmatprep.subr.mxu0 0.0
    %120 = vmatpush1.msra.mxu0 0.0
    %121 = vmatprep.subr.mxu0 0.0
    %122 = vmatpush1.msra.mxu0 0.0
    %123 = vmatprep.subr.mxu0 0.0
    %124 = vmatpush1.msra.mxu0 0.0
    %125 = vmatprep.subr.mxu0 0.0
    %126 = vmatpush1.msra.mxu0 0.0
    %127 = vmatprep.subr.mxu0 0.0
    %128 = vmatpush1.msra.mxu0 0.0
    %129 = vmatprep.subr.mxu0 0.0
    %130 = vmatpush1.msra.mxu0 0.0
    %131 = vmatprep.subr.mxu0 0.0
    %132 = vmatpush1.msra.mxu0 0.0
    %133 = vmatprep.subr.mxu0 0.0
    %134 = vmatpush1.msra.mxu0 0.0
    %135 = vmatprep.subr.mxu0 0.0
    %136 = vmatpush1.msra.mxu0 0.0
    %137 = vmatprep.subr.mxu0 0.0
    %138 = vmatpush1.msra.mxu0 0.0
    %139 = vmatprep.subr.mxu0 0.0
    %140 = vmatpush1.msra.mxu0 0.0
    %141 = vmatprep.mubr.f32.mxu0 0.0
    %142 = vmatmul.mubr.f32.gmra.mrb[0].mxu0 %v72
    %v143 = vpop.f32.mrb[0].mxu0
    %v144 = vadd.f32 %v69, %v143
    %v145 = vpop.f32.mrb[0].mxu0
    %146 = vmatprep.mubr.f32.mxu0 0.0
    %147 = vmatmul.mubr.f32.gmra.mrb[0].mxu0 %v75
    %v148 = vpop.f32.mrb[0].mxu0
    %v149 = vadd.f32 %v69, %v148
    %v150 = vpop.f32.mrb[0].mxu0
    %151 = vdwg.mxu0
    %v152 = vmax.f32 %v144, 0.0
    %v153 = vmax.f32 %v149, 0.0
    %v154 = vld [vmem:[#allocation7] sm:$0xff]
    %v155 = vld [vmem:[#allocation7 + $0x8] sm:$0xff]
    %v156 = vld [vmem:[#allocation7 + $0x10] sm:$0xff]
    %v157 = vld [vmem:[#allocation7 + $0x18] sm:$0xff]
    %v158 = vld [vmem:[#allocation7 + $0x20] sm:$0xff]
    %v159 = vld [vmem:[#allocation7 + $0x28] sm:$0xff]
    %v160 = vld [vmem:[#allocation7 + $0x30] sm:$0xff]
    %v161 = vld [vmem:[#allocation7 + $0x38] sm:$0xff]
    %v162 = vld [vmem:[#allocation7 + $0x40] sm:$0xff]
    %v163 = vld [vmem:[#allocation7 + $0x48] sm:$0xff]
    %v164 = vld [vmem:[#allocation7 + $0x50] sm:$0xff]
    %v165 = vld [vmem:[#allocation7 + $0x58] sm:$0xff]
    %v166 = vld [vmem:[#allocation7 + $0x60] sm:$0xff]
    %v167 = vld [vmem:[#allocation7 + $0x68] sm:$0xff]
    %v168 = vld [vmem:[#allocation7 + $0x70] sm:$0xff]
    %v169 = vld [vmem:[#allocation7 + $0x78] sm:$0xff]
    %v170 = vld [vmem:[%s3 + $0x1] sm:$0x1]
    %v171 = vlaneseq
    %v172 = vshrl.u32 %v171, 7
    %v173 = vsub.s32 0, %v172
    %v174 = vrot.slane %v170, %v173
    %175 = vmatprep.subr.mxu0 0.0
    %176 = vmatpush1.msra.mxu0 %v154
    %177 = vmatprep.subr.mxu0 0.0
    %178 = vmatpush1.msra.mxu0 %v155
    %179 = vmatprep.subr.mxu0 0.0
    %180 = vmatpush1.msra.mxu0 %v156
    %181 = vmatprep.subr.mxu0 0.0
    %182 = vmatpush1.msra.mxu0 %v157
    %183 = vmatprep.subr.mxu0 0.0
    %184 = vmatpush1.msra.mxu0 %v158
    %185 = vmatprep.subr.mxu0 0.0
    %186 = vmatpush1.msra.mxu0 %v159
    %187 = vmatprep.subr.mxu0 0.0
    %188 = vmatpush1.msra.mxu0 %v160
    %189 = vmatprep.subr.mxu0 0.0
    %190 = vmatpush1.msra.mxu0 %v161
    %191 = vmatprep.subr.mxu0 0.0
    %192 = vmatpush1.msra.mxu0 %v162
    %193 = vmatprep.subr.mxu0 0.0
    %194 = vmatpush1.msra.mxu0 %v163
    %195 = vmatprep.subr.mxu0 0.0
    %196 = vmatpush1.msra.mxu0 %v164
    %197 = vmatprep.subr.mxu0 0.0
    %198 = vmatpush1.msra.mxu0 %v165
    %199 = vmatprep.subr.mxu0 0.0
    %200 = vmatpush1.msra.mxu0 %v166
    %201 = vmatprep.subr.mxu0 0.0
    %202 = vmatpush1.msra.mxu0 %v167
    %203 = vmatprep.subr.mxu0 0.0
    %204 = vmatpush1.msra.mxu0 %v168
    %205 = vmatprep.subr.mxu0 0.0
    %206 = vmatpush1.msra.mxu0 %v169
    %207 = vmatprep.subr.mxu0 0.0
    %208 = vmatpush1.msra.mxu0 0.0
    %209 = vmatprep.subr.mxu0 0.0
    %210 = vmatpush1.msra.mxu0 0.0
    %211 = vmatprep.subr.mxu0 0.0
    %212 = vmatpush1.msra.mxu0 0.0
    %213 = vmatprep.subr.mxu0 0.0
    %214 = vmatpush1.msra.mxu0 0.0
    %215 = vmatprep.subr.mxu0 0.0
    %216 = vmatpush1.msra.mxu0 0.0
    %217 = vmatprep.subr.mxu0 0.0
    %218 = vmatpush1.msra.mxu0 0.0
    %219 = vmatprep.subr.mxu0 0.0
    %220 = vmatpush1.msra.mxu0 0.0
    %221 = vmatprep.subr.mxu0 0.0
    %222 = vmatpush1.msra.mxu0 0.0
    %223 = vmatprep.subr.mxu0 0.0
    %224 = vmatpush1.msra.mxu0 0.0
    %225 = vmatprep.subr.mxu0 0.0
    %226 = vmatpush1.msra.mxu0 0.0
    %227 = vmatprep.subr.mxu0 0.0
    %228 = vmatpush1.msra.mxu0 0.0
    %229 = vmatprep.subr.mxu0 0.0
    %230 = vmatpush1.msra.mxu0 0.0
    %231 = vmatprep.subr.mxu0 0.0
    %232 = vmatpush1.msra.mxu0 0.0
    %233 = vmatprep.subr.mxu0 0.0
    %234 = vmatpush1.msra.mxu0 0.0
    %235 = vmatprep.subr.mxu0 0.0
    %236 = vmatpush1.msra.mxu0 0.0
    %237 = vmatprep.subr.mxu0 0.0
    %238 = vmatpush1.msra.mxu0 0.0
    %239 = vmatprep.mubr.f32.mxu0 0.0
    %240 = vmatmul.mubr.f32.gmra.mrb[0].mxu0 %v152
    %v241 = vpop.f32.mrb[0].mxu0
    %v242 = vadd.f32 %v174, %v241
    %v243 = vpop.f32.mrb[0].mxu0
    %244 = vmatprep.mubr.f32.mxu0 0.0
    %245 = vmatmul.mubr.f32.gmra.mrb[0].mxu0 %v153
    %v246 = vpop.f32.mrb[0].mxu0
    %v247 = vadd.f32 %v174, %v246
    %v248 = vpop.f32.mrb[0].mxu0
    %249 = vdwg.mxu0
    %v250 = vmax.f32 %v242, 0.0
    %v251 = vmax.f32 %v247, 0.0
    %s252 = scalar_lea.vmem [#allocation7], 128
    %v253 = vld [vmem:[%s252] sm:$0xff]
    %v254 = vld [vmem:[%s252 + $0x8] sm:$0xff]
    %v255 = vld [vmem:[%s252 + $0x10] sm:$0xff]
    %v256 = vld [vmem:[%s252 + $0x18] sm:$0xff]
    %v257 = vld [vmem:[%s252 + $0x20] sm:$0xff]
    %v258 = vld [vmem:[%s252 + $0x28] sm:$0xff]
    %v259 = vld [vmem:[%s252 + $0x30] sm:$0xff]
    %v260 = vld [vmem:[%s252 + $0x38] sm:$0xff]
    %v261 = vld [vmem:[%s252 + $0x40] sm:$0xff]
    %v262 = vld [vmem:[%s252 + $0x48] sm:$0xff]
    %v263 = vld [vmem:[%s252 + $0x50] sm:$0xff]
    %v264 = vld [vmem:[%s252 + $0x58] sm:$0xff]
    %v265 = vld [vmem:[%s252 + $0x60] sm:$0xff]
    %v266 = vld [vmem:[%s252 + $0x68] sm:$0xff]
    %v267 = vld [vmem:[%s252 + $0x70] sm:$0xff]
    %v268 = vld [vmem:[%s252 + $0x78] sm:$0xff]
    %v269 = vld [vmem:[%s3 + $0x2] sm:$0x1]
    %v270 = vlaneseq
    %v271 = vshrl.u32 %v270, 7
    %v272 = vsub.s32 0, %v271
    %v273 = vrot.slane %v269, %v272
    %274 = vmatprep.subr.mxu0 0.0
    %275 = vmatpush1.msra.mxu0 %v253
    %276 = vmatprep.subr.mxu0 0.0
    %277 = vmatpush1.msra.mxu0 %v254
    %278 = vmatprep.subr.mxu0 0.0
    %279 = vmatpush1.msra.mxu0 %v255
    %280 = vmatprep.subr.mxu0 0.0
    %281 = vmatpush1.msra.mxu0 %v256
    %282 = vmatprep.subr.mxu0 0.0
    %283 = vmatpush1.msra.mxu0 %v257
    %284 = vmatprep.subr.mxu0 0.0
    %285 = vmatpush1.msra.mxu0 %v258
    %286 = vmatprep.subr.mxu0 0.0
    %287 = vmatpush1.msra.mxu0 %v259
    %288 = vmatprep.subr.mxu0 0.0
    %289 = vmatpush1.msra.mxu0 %v260
    %290 = vmatprep.subr.mxu0 0.0
    %291 = vmatpush1.msra.mxu0 %v261
    %292 = vmatprep.subr.mxu0 0.0
    %293 = vmatpush1.msra.mxu0 %v262
    %294 = vmatprep.subr.mxu0 0.0
    %295 = vmatpush1.msra.mxu0 %v263
    %296 = vmatprep.subr.mxu0 0.0
    %297 = vmatpush1.msra.mxu0 %v264
    %298 = vmatprep.subr.mxu0 0.0
    %299 = vmatpush1.msra.mxu0 %v265
    %300 = vmatprep.subr.mxu0 0.0
    %301 = vmatpush1.msra.mxu0 %v266
    %302 = vmatprep.subr.mxu0 0.0
    %303 = vmatpush1.msra.mxu0 %v267
    %304 = vmatprep.subr.mxu0 0.0
    %305 = vmatpush1.msra.mxu0 %v268
    %306 = vmatprep.subr.mxu0 0.0
    %307 = vmatpush1.msra.mxu0 0.0
    %308 = vmatprep.subr.mxu0 0.0
    %309 = vmatpush1.msra.mxu0 0.0
    %310 = vmatprep.subr.mxu0 0.0
    %311 = vmatpush1.msra.mxu0 0.0
    %312 = vmatprep.subr.mxu0 0.0
    %313 = vmatpush1.msra.mxu0 0.0
    %314 = vmatprep.subr.mxu0 0.0
    %315 = vmatpush1.msra.mxu0 0.0
    %316 = vmatprep.subr.mxu0 0.0
    %317 = vmatpush1.msra.mxu0 0.0
    %318 = vmatprep.subr.mxu0 0.0
    %319 = vmatpush1.msra.mxu0 0.0
    %320 = vmatprep.subr.mxu0 0.0
    %321 = vmatpush1.msra.mxu0 0.0
    %322 = vmatprep.subr.mxu0 0.0
    %323 = vmatpush1.msra.mxu0 0.0
    %324 = vmatprep.subr.mxu0 0.0
    %325 = vmatpush1.msra.mxu0 0.0
    %326 = vmatprep.subr.mxu0 0.0
    %327 = vmatpush1.msra.mxu0 0.0
    %328 = vmatprep.subr.mxu0 0.0
    %329 = vmatpush1.msra.mxu0 0.0
    %330 = vmatprep.subr.mxu0 0.0
    %331 = vmatpush1.msra.mxu0 0.0
    %332 = vmatprep.subr.mxu0 0.0
    %333 = vmatpush1.msra.mxu0 0.0
    %334 = vmatprep.subr.mxu0 0.0
    %335 = vmatpush1.msra.mxu0 0.0
    %336 = vmatprep.subr.mxu0 0.0
    %337 = vmatpush1.msra.mxu0 0.0
    %338 = vmatprep.mubr.f32.mxu0 0.0
    %339 = vmatmul.mubr.f32.gmra.mrb[0].mxu0 %v250
    %v340 = vpop.f32.mrb[0].mxu0
    %v341 = vadd.f32 %v273, %v340
    %v342 = vpop.f32.mrb[0].mxu0
    %343 = vmatprep.mubr.f32.mxu0 0.0
    %344 = vmatmul.mubr.f32.gmra.mrb[0].mxu0 %v251
    %v345 = vpop.f32.mrb[0].mxu0
    %v346 = vadd.f32 %v273, %v345
    %v347 = vpop.f32.mrb[0].mxu0
    %348 = vdwg.mxu0
    %v349 = vmax.f32 %v341, 0.0
    %v350 = vmax.f32 %v346, 0.0
    %s351 = scalar_lea.vmem [#allocation7], 256
    %v352 = vld [vmem:[%s351] sm:$0xff]
    %v353 = vld [vmem:[%s351 + $0x8] sm:$0xff]
    %v354 = vld [vmem:[%s351 + $0x10] sm:$0xff]
    %v355 = vld [vmem:[%s351 + $0x18] sm:$0xff]
    %v356 = vld [vmem:[%s351 + $0x20] sm:$0xff]
    %v357 = vld [vmem:[%s351 + $0x28] sm:$0xff]
    %v358 = vld [vmem:[%s351 + $0x30] sm:$0xff]
    %v359 = vld [vmem:[%s351 + $0x38] sm:$0xff]
    %v360 = vld [vmem:[%s351 + $0x40] sm:$0xff]
    %v361 = vld [vmem:[%s351 + $0x48] sm:$0xff]
    %v362 = vld [vmem:[%s351 + $0x50] sm:$0xff]
    %v363 = vld [vmem:[%s351 + $0x58] sm:$0xff]
    %v364 = vld [vmem:[%s351 + $0x60] sm:$0xff]
    %v365 = vld [vmem:[%s351 + $0x68] sm:$0xff]
    %v366 = vld [vmem:[%s351 + $0x70] sm:$0xff]
    %v367 = vld [vmem:[%s351 + $0x78] sm:$0xff]
    %v368 = vld [vmem:[%s3 + $0x3] sm:$0x1]
    %v369 = vlaneseq
    %v370 = vshrl.u32 %v369, 7
    %v371 = vsub.s32 0, %v370
    %v372 = vrot.slane %v368, %v371
    %373 = vmatprep.subr.mxu0 0.0
    %374 = vmatpush1.msra.mxu0 %v352
    %375 = vmatprep.subr.mxu0 0.0
    %376 = vmatpush1.msra.mxu0 %v353
    %377 = vmatprep.subr.mxu0 0.0
    %378 = vmatpush1.msra.mxu0 %v354
    %379 = vmatprep.subr.mxu0 0.0
    %380 = vmatpush1.msra.mxu0 %v355
    %381 = vmatprep.subr.mxu0 0.0
    %382 = vmatpush1.msra.mxu0 %v356
    %383 = vmatprep.subr.mxu0 0.0
    %384 = vmatpush1.msra.mxu0 %v357
    %385 = vmatprep.subr.mxu0 0.0
    %386 = vmatpush1.msra.mxu0 %v358
    %387 = vmatprep.subr.mxu0 0.0
    %388 = vmatpush1.msra.mxu0 %v359
    %389 = vmatprep.subr.mxu0 0.0
    %390 = vmatpush1.msra.mxu0 %v360
    %391 = vmatprep.subr.mxu0 0.0
    %392 = vmatpush1.msra.mxu0 %v361
    %393 = vmatprep.subr.mxu0 0.0
    %394 = vmatpush1.msra.mxu0 %v362
    %395 = vmatprep.subr.mxu0 0.0
    %396 = vmatpush1.msra.mxu0 %v363
    %397 = vmatprep.subr.mxu0 0.0
    %398 = vmatpush1.msra.mxu0 %v364
    %399 = vmatprep.subr.mxu0 0.0
    %400 = vmatpush1.msra.mxu0 %v365
    %401 = vmatprep.subr.mxu0 0.0
    %402 = vmatpush1.msra.mxu0 %v366
    %403 = vmatprep.subr.mxu0 0.0
    %404 = vmatpush1.msra.mxu0 %v367
    %405 = vmatprep.subr.mxu0 0.0
    %406 = vmatpush1.msra.mxu0 0.0
    %407 = vmatprep.subr.mxu0 0.0
    %408 = vmatpush1.msra.mxu0 0.0
    %409 = vmatprep.subr.mxu0 0.0
    %410 = vmatpush1.msra.mxu0 0.0
    %411 = vmatprep.subr.mxu0 0.0
    %412 = vmatpush1.msra.mxu0 0.0
    %413 = vmatprep.subr.mxu0 0.0
    %414 = vmatpush1.msra.mxu0 0.0
    %415 = vmatprep.subr.mxu0 0.0
    %416 = vmatpush1.msra.mxu0 0.0
    %417 = vmatprep.subr.mxu0 0.0
    %418 = vmatpush1.msra.mxu0 0.0
    %419 = vmatprep.subr.mxu0 0.0
    %420 = vmatpush1.msra.mxu0 0.0
    %421 = vmatprep.subr.mxu0 0.0
    %422 = vmatpush1.msra.mxu0 0.0
    %423 = vmatprep.subr.mxu0 0.0
    %424 = vmatpush1.msra.mxu0 0.0
    %425 = vmatprep.subr.mxu0 0.0
    %426 = vmatpush1.msra.mxu0 0.0
    %427 = vmatprep.subr.mxu0 0.0
    %428 = vmatpush1.msra.mxu0 0.0
    %429 = vmatprep.subr.mxu0 0.0
    %430 = vmatpush1.msra.mxu0 0.0
    %431 = vmatprep.subr.mxu0 0.0
    %432 = vmatpush1.msra.mxu0 0.0
    %433 = vmatprep.subr.mxu0 0.0
    %434 = vmatpush1.msra.mxu0 0.0
    %435 = vmatprep.subr.mxu0 0.0
    %436 = vmatpush1.msra.mxu0 0.0
    %437 = vmatprep.mubr.f32.mxu0 0.0
    %438 = vmatmul.mubr.f32.gmra.mrb[0].mxu0 %v349
    %v439 = vpop.f32.mrb[0].mxu0
    %v440 = vadd.f32 %v372, %v439
    %v441 = vpop.f32.mrb[0].mxu0
    %442 = vmatprep.mubr.f32.mxu0 0.0
    %443 = vmatmul.mubr.f32.gmra.mrb[0].mxu0 %v350
    %v444 = vpop.f32.mrb[0].mxu0
    %v445 = vadd.f32 %v372, %v444
    %v446 = vpop.f32.mrb[0].mxu0
    %447 = vdwg.mxu0
    %448 = vst [vmem:[#allocation8] sm:$0xff] %v440
    %449 = vst [vmem:[#allocation8 + $0x8] sm:$0xff] %v445
    // Predicated region
    $region30: #{tpu_custom_call.1} parent=1 // pred_check
      _
    $region31: #{tpu_custom_call.1} parent=1 // pred_check_branch
      %451 = sbr.rel (0) target = $region33
    $region32: #{tpu_custom_call.1} parent=1 // pred_region
      %s453 = ssub.s32 256, 256
      %454 = vsyncadd [#allocation4], %s453
      %s455 = sshll.u32 [#allocation8], 4
      %s456 = int_to_ptr.vmem [resolvable:$true] %s455
      %461 = dma.vmem_to_hbm [thread:$0]  %s456, 256, %s4, [#allocation4], 128, 128, 8
    $region33: #{tpu_custom_call.1} parent=1 // pred_fallthru
      _
    // Predicated region
    $region34: #{tpu_custom_call.1} parent=1 // pred_check
      _
    $region35: #{tpu_custom_call.1} parent=1 // pred_check_branch
      %463 = sbr.rel (0) target = $region37
    $region36: #{tpu_custom_call.1} parent=1 // pred_region
      %464 = dma.done [#allocation4], 256
    $region37: #{tpu_custom_call.1} parent=1 // pred_fallthru
      _
    %465 = vsyncpa [#allocation3], 1
    %466 = vsyncpa [#allocation6], 1
    %467 = vsyncpa [#allocation4], 1

// kernel: tpu_custom_call.1
$region0: #{tpu_custom_call.1}
  #allocation0 [shape = 'u32[]', space=smem, size = 0x4, offset = 0x4, fixed_abs, tag = 'smem constant byte address 0x4 - core index']
  #allocation1 [shape = 'u32[144,128]{1,0:T(1,128)}', space=vmem, size = 0x12000, scoped, tag = 'internal scratch']
  %s0 = inlined_call_operand.hbm [shape: f32[16,32], index: 0, kind: input, shape index: {}]
  %s1 = inlined_call_operand.hbm [shape: f32[32,128], index: 1, kind: input, shape index: {}]
  %s2 = inlined_call_operand.hbm [shape: f32[3,128,128], index: 2, kind: input, shape index: {}]
  %s3 = inlined_call_operand.vmem [shape: f32[8,128], index: 3, kind: input, shape index: {}]
  %s4 = inlined_call_operand.hbm [shape: f32[16,128], index: 4, kind: output, shape index: {}]
  %s5 = sld [smem:[#allocation0]]
  $region38: #{tpu_custom_call.1} parent=0
    _
  %s7 = ssub.s32 1, %s5
  %s8 = scalar_select 0, %s7, %s5
  $region1: #{tpu_custom_call.1} parent=0
    #allocation2 [shape = 'u8[8192]{0}', space=vmem, size = 0x2000, scoped, tag = 'input window, operand 0, single buffered']
    #allocation3 [shape = 's32[1]{0}', space=sflag, size = 0x4, scoped, tag = 'scoped memory for tpu_custom_call.1']
    #allocation4 [shape = 's32[1]{0}', space=sflag, size = 0x4, scoped, tag = 'scoped memory for tpu_custom_call.1']
    #allocation5 [shape = 'u8[16384]{0}', space=vmem, size = 0x4000, scoped, tag = 'input window, operand 1, single buffered']
    #allocation6 [shape = 's32[1]{0}', space=sflag, size = 0x4, scoped, tag = 'scoped memory for tpu_custom_call.1']
    #allocation7 [shape = 'u8[196608]{0}', space=vmem, size = 0x30000, scoped, tag = 'input window, operand 2, single buffered']
    #allocation8 [shape = 'u8[8192]{0}', space=vmem, size = 0x2000, scoped, tag = 'output window, operand 0, single buffered']
    %9 = vsyncpa [#allocation3], 0
    %10 = vsyncpa [#allocation6], 0
    %11 = vsyncpa [#allocation4], 0
    // Predicated region
    $region2: #{tpu_custom_call.1} parent=1 // pred_check
      _
    $region3: #{tpu_custom_call.1} parent=1 // pred_check_branch
      %13 = sbr.rel (0) target = $region5
    $region4: #{tpu_custom_call.1} parent=1 // pred_region
      %s15 = ssub.s32 256, 256
      %16 = vsyncadd [#allocation3], %s15
      %s17 = sshll.u32 [#allocation2], 4
      %s18 = int_to_ptr.vmem [resolvable:$true] %s17
      %23 = dma.hbm_to_vmem [thread:$0]  %s0, 256, %s18, [#allocation3], 128, 128, 8
    $region5: #{tpu_custom_call.1} parent=1 // pred_fallthru
      _
    // Predicated region
    $region6: #{tpu_custom_call.1} parent=1 // pred_check
      _
    $region7: #{tpu_custom_call.1} parent=1 // pred_check_branch
      %25 = sbr.rel (0) target = $region9
    $region8: #{tpu_custom_call.1} parent=1 // pred_region
      %s27 = ssub.s32 512, 512
      %28 = vsyncadd [#allocation6], %s27
      %s29 = sshll.u32 [#allocation5], 4
      %s30 = int_to_ptr.vmem [resolvable:$true] %s29
      %35 = dma.hbm_to_vmem [thread:$0]  %s1, 512, %s30, [#allocation6], 128, 128, 8
    $region9: #{tpu_custom_call.1} parent=1 // pred_fallthru
      _
    // Predicated region
    $region10: #{tpu_custom_call.1} parent=1 // pred_check
      _
    $region11: #{tpu_custom_call.1} parent=1 // pred_check_branch
      %37 = sbr.rel (0) target = $region13
    $region12: #{tpu_custom_call.1} parent=1 // pred_region
      %s39 = ssub.s32 6144, 6144
      %40 = vsyncadd [#allocation6], %s39
      %s41 = sshll.u32 [#allocation7], 4
      %s42 = int_to_ptr.vmem [resolvable:$true] %s41
      %47 = dma.hbm_to_vmem [thread:$0]  %s2, 6144, %s42, [#allocation6], 128, 128, 8
    $region13: #{tpu_custom_call.1} parent=1 // pred_fallthru
      _
    // Predicated region
    $region14: #{tpu_custom_call.1} parent=1 // pred_check
      _
    $region15: #{tpu_custom_call.1} parent=1 // pred_check_branch
      %49 = sbr.rel (0) target = $region17
    $region16: #{tpu_custom_call.1} parent=1 // pred_region
      _
    $region17: #{tpu_custom_call.1} parent=1 // pred_fallthru
      _
    // Predicated region
    $region18: #{tpu_custom_call.1} parent=1 // pred_check
      _
    $region19: #{tpu_custom_call.1} parent=1 // pred_check_branch
      %51 = sbr.rel (0) target = $region21
    $region20: #{tpu_custom_call.1} parent=1 // pred_region
      %52 = dma.done [#allocation3], 256
    $region21: #{tpu_custom_call.1} parent=1 // pred_fallthru
      _
    // Predicated region
    $region22: #{tpu_custom_call.1} parent=1 // pred_check
      _
    $region23: #{tpu_custom_call.1} parent=1 // pred_check_branch
      %54 = sbr.rel (0) target = $region25
    $region24: #{tpu_custom_call.1} parent=1 // pred_region
      %55 = dma.done [#allocation6], 512
    $region25: #{tpu_custom_call.1} parent=1 // pred_fallthru
      _
    // Predicated region
    $region26: #{tpu_custom_call.1} parent=1 // pred_check
      _
    $region27: #{tpu_custom_call.1} parent=1 // pred_check_branch
      %57 = sbr.rel (0) target = $region29
    $region28: #{tpu_custom_call.1} parent=1 // pred_region
      %58 = dma.done [#allocation6], 6144
    $region29: #{tpu_custom_call.1} parent=1 // pred_fallthru
      _
    %v59 = vld [vmem:[#allocation2] sm:$0xff]
    %v60 = vld [vmem:[#allocation2 + $0x8] sm:$0xff]
    %v61 = vld [vmem:[#allocation5] sm:$0xff]
    %v62 = vld [vmem:[#allocation5 + $0x8] sm:$0xff]
    %v63 = vld [vmem:[#allocation5 + $0x10] sm:$0xff]
    %v64 = vld [vmem:[#allocation5 + $0x18] sm:$0xff]
    %v65 = vld [vmem:[%s3] sm:$0x1]
    %v66 = vlaneseq
    %v67 = vshrl.u32 %v66, 7
    %v68 = vsub.s32 0, %v67
    %v69 = vrot.slane %v65, %v68
    %vm70 = vcmask 261120
    %v72 = vsel %vm70, %v59, 0
    %v75 = vsel %vm70, %v60, 0
    %77 = vmatprep.subr.mxu0 0.0
    %78 = vmatpush1.msra.mxu0 %v61
    %79 = vmatprep.subr.mxu0 0.0
    %80 = vmatpush1.msra.mxu0 %v62
    %81 = vmatprep.subr.mxu0 0.0
    %82 = vmatpush1.msra.mxu0 %v63
    %83 = vmatprep.subr.mxu0 0.0
    %84 = vmatpush1.msra.mxu0 %v64
    %85 = vmatprep.subr.mxu0 0.0
    %86 = vmatpush1.msra.mxu0 0.0
    %87 = vmatprep.subr.mxu0 0.0
    %88 = vmatpush1.msra.mxu0 0.0
    %89 = vmatprep.subr.mxu0 0.0
    %90 = vmatpush1.msra.mxu0 0.0
    %91 = vmatprep.subr.mxu0 0.0
    %92 = vmatpush1.msra.mxu0 0.0
    %93 = vmatprep.subr.mxu0 0.0
    %94 = vmatpush1.msra.mxu0 0.0
    %95 = vmatprep.subr.mxu0 0.0
    %96 = vmatpush1.msra.mxu0 0.0
    %97 = vmatprep.subr.mxu0 0.0
    %98 = vmatpush1.msra.mxu0 0.0
    %99 = vmatprep.subr.mxu0 0.0
    %100 = vmatpush1.msra.mxu0 0.0
    %101 = vmatprep.subr.mxu0 0.0
    %102 = vmatpush1.msra.mxu0 0.0
    %103 = vmatprep.subr.mxu0 0.0
    %104 = vmatpush1.msra.mxu0 0.0
    %105 = vmatprep.subr.mxu0 0.0
    %106 = vmatpush1.msra.mxu0 0.0
    %107 = vmatprep.subr.mxu0 0.0
    %108 = vmatpush1.msra.mxu0 0.0
    %109 = vmatprep.subr.mxu0 0.0
    %110 = vmatpush1.msra.mxu0 0.0
    %111 = vmatprep.subr.mxu0 0.0
    %112 = vmatpush1.msra.mxu0 0.0
    %113 = vmatprep.subr.mxu0 0.0
    %114 = vmatpush1.msra.mxu0 0.0
    %115 = vmatprep.subr.mxu0 0.0
    %116 = vmatpush1.msra.mxu0 0.0
    %117 = vmatprep.subr.mxu0 0.0
    %118 = vmatpush1.msra.mxu0 0.0
    %119 = vmatprep.subr.mxu0 0.0
    %120 = vmatpush1.msra.mxu0 0.0
    %121 = vmatprep.subr.mxu0 0.0
    %122 = vmatpush1.msra.mxu0 0.0
    %123 = vmatprep.subr.mxu0 0.0
    %124 = vmatpush1.msra.mxu0 0.0
    %125 = vmatprep.subr.mxu0 0.0
    %126 = vmatpush1.msra.mxu0 0.0
    %127 = vmatprep.subr.mxu0 0.0
    %128 = vmatpush1.msra.mxu0 0.0
    %129 = vmatprep.subr.mxu0 0.0
    %130 = vmatpush1.msra.mxu0 0.0
    %131 = vmatprep.subr.mxu0 0.0
    %132 = vmatpush1.msra.mxu0 0.0
    %133 = vmatprep.subr.mxu0 0.0
    %134 = vmatpush1.msra.mxu0 0.0
    %135 = vmatprep.subr.mxu0 0.0
    %136 = vmatpush1.msra.mxu0 0.0
    %137 = vmatprep.subr.mxu0 0.0
    %138 = vmatpush1.msra.mxu0 0.0
    %139 = vmatprep.subr.mxu0 0.0
    %140 = vmatpush1.msra.mxu0 0.0
    %141 = vmatprep.mubr.f32.mxu0 0.0
    %142 = vmatmul.mubr.f32.gmra.mrb[0].mxu0 %v72
    %v143 = vpop.f32.mrb[0].mxu0
    %v144 = vadd.f32 %v69, %v143
    %v145 = vpop.f32.mrb[0].mxu0
    %146 = vmatprep.mubr.f32.mxu0 0.0
    %147 = vmatmul.mubr.f32.gmra.mrb[0].mxu0 %v75
    %v148 = vpop.f32.mrb[0].mxu0
    %v149 = vadd.f32 %v69, %v148
    %v150 = vpop.f32.mrb[0].mxu0
    %151 = vdwg.mxu0
    %v152 = vmax.f32 %v144, 0.0
    %v153 = vmax.f32 %v149, 0.0
    %v154 = vld [vmem:[#allocation7] sm:$0xff]
    %v155 = vld [vmem:[#allocation7 + $0x8] sm:$0xff]
    %v156 = vld [vmem:[#allocation7 + $0x10] sm:$0xff]
    %v157 = vld [vmem:[#allocation7 + $0x18] sm:$0xff]
    %v158 = vld [vmem:[#allocation7 + $0x20] sm:$0xff]
    %v159 = vld [vmem:[#allocation7 + $0x28] sm:$0xff]
    %v160 = vld [vmem:[#allocation7 + $0x30] sm:$0xff]
    %v161 = vld [vmem:[#allocation7 + $0x38] sm:$0xff]
    %v162 = vld [vmem:[#allocation7 + $0x40] sm:$0xff]
    %v163 = vld [vmem:[#allocation7 + $0x48] sm:$0xff]
    %v164 = vld [vmem:[#allocation7 + $0x50] sm:$0xff]
    %v165 = vld [vmem:[#allocation7 + $0x58] sm:$0xff]
    %v166 = vld [vmem:[#allocation7 + $0x60] sm:$0xff]
    %v167 = vld [vmem:[#allocation7 + $0x68] sm:$0xff]
    %v168 = vld [vmem:[#allocation7 + $0x70] sm:$0xff]
    %v169 = vld [vmem:[#allocation7 + $0x78] sm:$0xff]
    %v170 = vld [vmem:[%s3 + $0x1] sm:$0x1]
    %v171 = vlaneseq
    %v172 = vshrl.u32 %v171, 7
    %v173 = vsub.s32 0, %v172
    %v174 = vrot.slane %v170, %v173
    %175 = vmatprep.subr.mxu0 0.0
    %176 = vmatpush1.msra.mxu0 %v154
    %177 = vmatprep.subr.mxu0 0.0
    %178 = vmatpush1.msra.mxu0 %v155
    %179 = vmatprep.subr.mxu0 0.0
    %180 = vmatpush1.msra.mxu0 %v156
    %181 = vmatprep.subr.mxu0 0.0
    %182 = vmatpush1.msra.mxu0 %v157
    %183 = vmatprep.subr.mxu0 0.0
    %184 = vmatpush1.msra.mxu0 %v158
    %185 = vmatprep.subr.mxu0 0.0
    %186 = vmatpush1.msra.mxu0 %v159
    %187 = vmatprep.subr.mxu0 0.0
    %188 = vmatpush1.msra.mxu0 %v160
    %189 = vmatprep.subr.mxu0 0.0
    %190 = vmatpush1.msra.mxu0 %v161
    %191 = vmatprep.subr.mxu0 0.0
    %192 = vmatpush1.msra.mxu0 %v162
    %193 = vmatprep.subr.mxu0 0.0
    %194 = vmatpush1.msra.mxu0 %v163
    %195 = vmatprep.subr.mxu0 0.0
    %196 = vmatpush1.msra.mxu0 %v164
    %197 = vmatprep.subr.mxu0 0.0
    %198 = vmatpush1.msra.mxu0 %v165
    %199 = vmatprep.subr.mxu0 0.0
    %200 = vmatpush1.msra.mxu0 %v166
    %201 = vmatprep.subr.mxu0 0.0
    %202 = vmatpush1.msra.mxu0 %v167
    %203 = vmatprep.subr.mxu0 0.0
    %204 = vmatpush1.msra.mxu0 %v168
    %205 = vmatprep.subr.mxu0 0.0
    %206 = vmatpush1.msra.mxu0 %v169
    %207 = vmatprep.subr.mxu0 0.0
    %208 = vmatpush1.msra.mxu0 0.0
    %209 = vmatprep.subr.mxu0 0.0
    %210 = vmatpush1.msra.mxu0 0.0
    %211 = vmatprep.subr.mxu0 0.0
    %212 = vmatpush1.msra.mxu0 0.0
    %213 = vmatprep.subr.mxu0 0.0
    %214 = vmatpush1.msra.mxu0 0.0
    %215 = vmatprep.subr.mxu0 0.0
    %216 = vmatpush1.msra.mxu0 0.0
    %217 = vmatprep.subr.mxu0 0.0
    %218 = vmatpush1.msra.mxu0 0.0
    %219 = vmatprep.subr.mxu0 0.0
    %220 = vmatpush1.msra.mxu0 0.0
    %221 = vmatprep.subr.mxu0 0.0
    %222 = vmatpush1.msra.mxu0 0.0
    %223 = vmatprep.subr.mxu0 0.0
    %224 = vmatpush1.msra.mxu0 0.0
    %225 = vmatprep.subr.mxu0 0.0
    %226 = vmatpush1.msra.mxu0 0.0
    %227 = vmatprep.subr.mxu0 0.0
    %228 = vmatpush1.msra.mxu0 0.0
    %229 = vmatprep.subr.mxu0 0.0
    %230 = vmatpush1.msra.mxu0 0.0
    %231 = vmatprep.subr.mxu0 0.0
    %232 = vmatpush1.msra.mxu0 0.0
    %233 = vmatprep.subr.mxu0 0.0
    %234 = vmatpush1.msra.mxu0 0.0
    %235 = vmatprep.subr.mxu0 0.0
    %236 = vmatpush1.msra.mxu0 0.0
    %237 = vmatprep.subr.mxu0 0.0
    %238 = vmatpush1.msra.mxu0 0.0
    %239 = vmatprep.mubr.f32.mxu0 0.0
    %240 = vmatmul.mubr.f32.gmra.mrb[0].mxu0 %v152
    %v241 = vpop.f32.mrb[0].mxu0
    %v242 = vadd.f32 %v174, %v241
    %v243 = vpop.f32.mrb[0].mxu0
    %244 = vmatprep.mubr.f32.mxu0 0.0
    %245 = vmatmul.mubr.f32.gmra.mrb[0].mxu0 %v153
    %v246 = vpop.f32.mrb[0].mxu0
    %v247 = vadd.f32 %v174, %v246
    %v248 = vpop.f32.mrb[0].mxu0
    %249 = vdwg.mxu0
    %v250 = vmax.f32 %v242, 0.0
    %v251 = vmax.f32 %v247, 0.0
    %s252 = scalar_lea.vmem [#allocation7], 128
    %v253 = vld [vmem:[%s252] sm:$0xff]
    %v254 = vld [vmem:[%s252 + $0x8] sm:$0xff]
    %v255 = vld [vmem:[%s252 + $0x10] sm:$0xff]
    %v256 = vld [vmem:[%s252 + $0x18] sm:$0xff]
    %v257 = vld [vmem:[%s252 + $0x20] sm:$0xff]
    %v258 = vld [vmem:[%s252 + $0x28] sm:$0xff]
    %v259 = vld [vmem:[%s252 + $0x30] sm:$0xff]
    %v260 = vld [vmem:[%s252 + $0x38] sm:$0xff]
    %v261 = vld [vmem:[%s252 + $0x40] sm:$0xff]
    %v262 = vld [vmem:[%s252 + $0x48] sm:$0xff]
    %v263 = vld [vmem:[%s252 + $0x50] sm:$0xff]
    %v264 = vld [vmem:[%s252 + $0x58] sm:$0xff]
    %v265 = vld [vmem:[%s252 + $0x60] sm:$0xff]
    %v266 = vld [vmem:[%s252 + $0x68] sm:$0xff]
    %v267 = vld [vmem:[%s252 + $0x70] sm:$0xff]
    %v268 = vld [vmem:[%s252 + $0x78] sm:$0xff]
    %v269 = vld [vmem:[%s3 + $0x2] sm:$0x1]
    %v270 = vlaneseq
    %v271 = vshrl.u32 %v270, 7
    %v272 = vsub.s32 0, %v271
    %v273 = vrot.slane %v269, %v272
    %274 = vmatprep.subr.mxu0 0.0
    %275 = vmatpush1.msra.mxu0 %v253
    %276 = vmatprep.subr.mxu0 0.0
    %277 = vmatpush1.msra.mxu0 %v254
    %278 = vmatprep.subr.mxu0 0.0
    %279 = vmatpush1.msra.mxu0 %v255
    %280 = vmatprep.subr.mxu0 0.0
    %281 = vmatpush1.msra.mxu0 %v256
    %282 = vmatprep.subr.mxu0 0.0
    %283 = vmatpush1.msra.mxu0 %v257
    %284 = vmatprep.subr.mxu0 0.0
    %285 = vmatpush1.msra.mxu0 %v258
    %286 = vmatprep.subr.mxu0 0.0
    %287 = vmatpush1.msra.mxu0 %v259
    %288 = vmatprep.subr.mxu0 0.0
    %289 = vmatpush1.msra.mxu0 %v260
    %290 = vmatprep.subr.mxu0 0.0
    %291 = vmatpush1.msra.mxu0 %v261
    %292 = vmatprep.subr.mxu0 0.0
    %293 = vmatpush1.msra.mxu0 %v262
    %294 = vmatprep.subr.mxu0 0.0
    %295 = vmatpush1.msra.mxu0 %v263
    %296 = vmatprep.subr.mxu0 0.0
    %297 = vmatpush1.msra.mxu0 %v264
    %298 = vmatprep.subr.mxu0 0.0
    %299 = vmatpush1.msra.mxu0 %v265
    %300 = vmatprep.subr.mxu0 0.0
    %301 = vmatpush1.msra.mxu0 %v266
    %302 = vmatprep.subr.mxu0 0.0
    %303 = vmatpush1.msra.mxu0 %v267
    %304 = vmatprep.subr.mxu0 0.0
    %305 = vmatpush1.msra.mxu0 %v268
    %306 = vmatprep.subr.mxu0 0.0
    %307 = vmatpush1.msra.mxu0 0.0
    %308 = vmatprep.subr.mxu0 0.0
    %309 = vmatpush1.msra.mxu0 0.0
    %310 = vmatprep.subr.mxu0 0.0
    %311 = vmatpush1.msra.mxu0 0.0
    %312 = vmatprep.subr.mxu0 0.0
    %313 = vmatpush1.msra.mxu0 0.0
    %314 = vmatprep.subr.mxu0 0.0
    %315 = vmatpush1.msra.mxu0 0.0
    %316 = vmatprep.subr.mxu0 0.0
    %317 = vmatpush1.msra.mxu0 0.0
    %318 = vmatprep.subr.mxu0 0.0
    %319 = vmatpush1.msra.mxu0 0.0
    %320 = vmatprep.subr.mxu0 0.0
    %321 = vmatpush1.msra.mxu0 0.0
    %322 = vmatprep.subr.mxu0 0.0
    %323 = vmatpush1.msra.mxu0 0.0
    %324 = vmatprep.subr.mxu0 0.0
    %325 = vmatpush1.msra.mxu0 0.0
    %326 = vmatprep.subr.mxu0 0.0
    %327 = vmatpush1.msra.mxu0 0.0
    %328 = vmatprep.subr.mxu0 0.0
    %329 = vmatpush1.msra.mxu0 0.0
    %330 = vmatprep.subr.mxu0 0.0
    %331 = vmatpush1.msra.mxu0 0.0
    %332 = vmatprep.subr.mxu0 0.0
    %333 = vmatpush1.msra.mxu0 0.0
    %334 = vmatprep.subr.mxu0 0.0
    %335 = vmatpush1.msra.mxu0 0.0
    %336 = vmatprep.subr.mxu0 0.0
    %337 = vmatpush1.msra.mxu0 0.0
    %338 = vmatprep.mubr.f32.mxu0 0.0
    %339 = vmatmul.mubr.f32.gmra.mrb[0].mxu0 %v250
    %v340 = vpop.f32.mrb[0].mxu0
    %v341 = vadd.f32 %v273, %v340
    %v342 = vpop.f32.mrb[0].mxu0
    %343 = vmatprep.mubr.f32.mxu0 0.0
    %344 = vmatmul.mubr.f32.gmra.mrb[0].mxu0 %v251
    %v345 = vpop.f32.mrb[0].mxu0
    %v346 = vadd.f32 %v273, %v345
    %v347 = vpop.f32.mrb[0].mxu0
    %348 = vdwg.mxu0
    %v349 = vmax.f32 %v341, 0.0
    %v350 = vmax.f32 %v346, 0.0
    %s351 = scalar_lea.vmem [#allocation7], 256
    %v352 = vld [vmem:[%s351] sm:$0xff]
    %v353 = vld [vmem:[%s351 + $0x8] sm:$0xff]
    %v354 = vld [vmem:[%s351 + $0x10] sm:$0xff]
    %v355 = vld [vmem:[%s351 + $0x18] sm:$0xff]
    %v356 = vld [vmem:[%s351 + $0x20] sm:$0xff]
    %v357 = vld [vmem:[%s351 + $0x28] sm:$0xff]
    %v358 = vld [vmem:[%s351 + $0x30] sm:$0xff]
    %v359 = vld [vmem:[%s351 + $0x38] sm:$0xff]
    %v360 = vld [vmem:[%s351 + $0x40] sm:$0xff]
    %v361 = vld [vmem:[%s351 + $0x48] sm:$0xff]
    %v362 = vld [vmem:[%s351 + $0x50] sm:$0xff]
    %v363 = vld [vmem:[%s351 + $0x58] sm:$0xff]
    %v364 = vld [vmem:[%s351 + $0x60] sm:$0xff]
    %v365 = vld [vmem:[%s351 + $0x68] sm:$0xff]
    %v366 = vld [vmem:[%s351 + $0x70] sm:$0xff]
    %v367 = vld [vmem:[%s351 + $0x78] sm:$0xff]
    %v368 = vld [vmem:[%s3 + $0x3] sm:$0x1]
    %v369 = vlaneseq
    %v370 = vshrl.u32 %v369, 7
    %v371 = vsub.s32 0, %v370
    %v372 = vrot.slane %v368, %v371
    %373 = vmatprep.subr.mxu0 0.0
    %374 = vmatpush1.msra.mxu0 %v352
    %375 = vmatprep.subr.mxu0 0.0
    %376 = vmatpush1.msra.mxu0 %v353
    %377 = vmatprep.subr.mxu0 0.0
    %378 = vmatpush1.msra.mxu0 %v354
    %379 = vmatprep.subr.mxu0 0.0
    %380 = vmatpush1.msra.mxu0 %v355
    %381 = vmatprep.subr.mxu0 0.0
    %382 = vmatpush1.msra.mxu0 %v356
    %383 = vmatprep.subr.mxu0 0.0
    %384 = vmatpush1.msra.mxu0 %v357
    %385 = vmatprep.subr.mxu0 0.0
    %386 = vmatpush1.msra.mxu0 %v358
    %387 = vmatprep.subr.mxu0 0.0
    %388 = vmatpush1.msra.mxu0 %v359
    %389 = vmatprep.subr.mxu0 0.0
    %390 = vmatpush1.msra.mxu0 %v360
    %391 = vmatprep.subr.mxu0 0.0
    %392 = vmatpush1.msra.mxu0 %v361
    %393 = vmatprep.subr.mxu0 0.0
    %394 = vmatpush1.msra.mxu0 %v362
    %395 = vmatprep.subr.mxu0 0.0
    %396 = vmatpush1.msra.mxu0 %v363
    %397 = vmatprep.subr.mxu0 0.0
    %398 = vmatpush1.msra.mxu0 %v364
    %399 = vmatprep.subr.mxu0 0.0
    %400 = vmatpush1.msra.mxu0 %v365
    %401 = vmatprep.subr.mxu0 0.0
    %402 = vmatpush1.msra.mxu0 %v366
    %403 = vmatprep.subr.mxu0 0.0
    %404 = vmatpush1.msra.mxu0 %v367
    %405 = vmatprep.subr.mxu0 0.0
    %406 = vmatpush1.msra.mxu0 0.0
    %407 = vmatprep.subr.mxu0 0.0
    %408 = vmatpush1.msra.mxu0 0.0
    %409 = vmatprep.subr.mxu0 0.0
    %410 = vmatpush1.msra.mxu0 0.0
    %411 = vmatprep.subr.mxu0 0.0
    %412 = vmatpush1.msra.mxu0 0.0
    %413 = vmatprep.subr.mxu0 0.0
    %414 = vmatpush1.msra.mxu0 0.0
    %415 = vmatprep.subr.mxu0 0.0
    %416 = vmatpush1.msra.mxu0 0.0
    %417 = vmatprep.subr.mxu0 0.0
    %418 = vmatpush1.msra.mxu0 0.0
    %419 = vmatprep.subr.mxu0 0.0
    %420 = vmatpush1.msra.mxu0 0.0
    %421 = vmatprep.subr.mxu0 0.0
    %422 = vmatpush1.msra.mxu0 0.0
    %423 = vmatprep.subr.mxu0 0.0
    %424 = vmatpush1.msra.mxu0 0.0
    %425 = vmatprep.subr.mxu0 0.0
    %426 = vmatpush1.msra.mxu0 0.0
    %427 = vmatprep.subr.mxu0 0.0
    %428 = vmatpush1.msra.mxu0 0.0
    %429 = vmatprep.subr.mxu0 0.0
    %430 = vmatpush1.msra.mxu0 0.0
    %431 = vmatprep.subr.mxu0 0.0
    %432 = vmatpush1.msra.mxu0 0.0
    %433 = vmatprep.subr.mxu0 0.0
    %434 = vmatpush1.msra.mxu0 0.0
    %435 = vmatprep.subr.mxu0 0.0
    %436 = vmatpush1.msra.mxu0 0.0
    %437 = vmatprep.mubr.f32.mxu0 0.0
    %438 = vmatmul.mubr.f32.gmra.mrb[0].mxu0 %v349
    %v439 = vpop.f32.mrb[0].mxu0
    %v440 = vadd.f32 %v372, %v439
    %v441 = vpop.f32.mrb[0].mxu0
    %442 = vmatprep.mubr.f32.mxu0 0.0
    %443 = vmatmul.mubr.f32.gmra.mrb[0].mxu0 %v350
    %v444 = vpop.f32.mrb[0].mxu0
    %v445 = vadd.f32 %v372, %v444
    %v446 = vpop.f32.mrb[0].mxu0
    %447 = vdwg.mxu0
    %448 = vst [vmem:[#allocation8] sm:$0xff] %v440
    %449 = vst [vmem:[#allocation8 + $0x8] sm:$0xff] %v445
    // Predicated region
    $region30: #{tpu_custom_call.1} parent=1 // pred_check
      _
    $region31: #{tpu_custom_call.1} parent=1 // pred_check_branch
      %451 = sbr.rel (0) target = $region33
    $region32: #{tpu_custom_call.1} parent=1 // pred_region
      %s453 = ssub.s32 256, 256
      %454 = vsyncadd [#allocation4], %s453
      %s455 = sshll.u32 [#allocation8], 4
      %s456 = int_to_ptr.vmem [resolvable:$true] %s455
      %461 = dma.vmem_to_hbm [thread:$0]  %s456, 256, %s4, [#allocation4], 128, 128, 8
    $region33: #{tpu_custom_call.1} parent=1 // pred_fallthru
      _
    // Predicated region
    $region34: #{tpu_custom_call.1} parent=1 // pred_check
      _
    $region35: #{tpu_custom_call.1} parent=1 // pred_check_branch
      %463 = sbr.rel (0) target = $region37
    $region36: #{tpu_custom_call.1} parent=1 // pred_region
      %464 = dma.done [#allocation4], 256
    $region37: #{tpu_custom_call.1} parent=1 // pred_fallthru
      _
    %465 = vsyncpa [#allocation3], 1
    %466 = vsyncpa [#allocation6], 1
    %467 = vsyncpa [#allocation4], 1

</llo_original>
